<compile_context>
chip_gen: v7x
topology: tpu7x:2x2x1
jax: 0.10.0
libtpu: 0.0.40
codegen_flags: <defaults>
</compile_context>

<pallas_src>
import functools

import jax
import jax.numpy as jnp
from jax.experimental import pallas as pl
from jax.experimental.pallas import tpu as pltpu

# A @ B^T contraction (both contract on their last dim) — standard NT matmul.
_NT_DIMS = (((1,), (1,)), ((), ()))


def _round_up(x, m):
    return ((x + m - 1) // m) * m


def _value_kernel(x_ref, w1_ref, b1_ref, w2_ref, w3_ref, o_ref, *, compute_dtype):
    # state tile: (TB, num_inputs)
    x = x_ref[...].astype(compute_dtype)

    # linear1 + relu  (bias kept explicit; b1 also injects the "ones channel")
    h1 = jnp.dot(x, w1_ref[...], preferred_element_type=jnp.float32)
    h1 = jnp.maximum(h1 + b1_ref[...].astype(jnp.float32), 0.0)          # (TB, HP) f32

    # linear2 + relu  (b2 folded into w2 via the ones channel)
    h2 = jnp.dot(h1.astype(compute_dtype), w2_ref[...],
                 preferred_element_type=jnp.float32)
    h2 = jnp.maximum(h2, 0.0)                                            # (TB, HP) f32

    # linear3 (b3 folded into w3).  Computed transposed so the batch lands on
    # the lane axis: (8, HP) @ (TB, HP)^T -> (8, TB); only row 0 is meaningful.
    out = jax.lax.dot_general(w3_ref[...], h2.astype(compute_dtype),
                              dimension_numbers=_NT_DIMS,
                              preferred_element_type=jnp.float32)
    o_ref[...] = out.astype(o_ref.dtype)


def init_params(key, num_inputs, hidden_dim):
    """Xavier-uniform (gain=1) weights, zero biases — matches weights_init_.
    Weights stored as [in, out]."""
    def xavier(k, fan_in, fan_out):
        limit = jnp.sqrt(6.0 / (fan_in + fan_out))
        return jax.random.uniform(k, (fan_in, fan_out), jnp.float32,
                                  minval=-limit, maxval=limit)

    k1, k2, k3 = jax.random.split(key, 3)
    return {
        "w1": xavier(k1, num_inputs, hidden_dim),
        "b1": jnp.zeros((1, hidden_dim), jnp.float32),
        "w2": xavier(k2, hidden_dim, hidden_dim),
        "b2": jnp.zeros((1, hidden_dim), jnp.float32),
        "w3": xavier(k3, hidden_dim, 1),
        "b3": jnp.zeros((1, 1), jnp.float32),
    }


def prepare_params(params, *, compute_dtype=jnp.float32):
    """Fold biases into zero-padded, lane-dense (128-wide) weight matrices.

    Padded hidden layout: channels [0, hidden) carry the real activations,
    channel `hidden` is a constant-1 "ones channel" (injected by b1p, carried
    by w2p) that multiplies the folded b2/b3 rows, remaining channels are 0.
    """
    w1, b1 = params["w1"], params["b1"]
    w2, b2 = params["w2"], params["b2"]
    w3, b3 = params["w3"], params["b3"]
    num_inputs, hidden = w1.shape
    hp = _round_up(hidden + 1, 128)
    oc = hidden  # index of the ones channel

    w1p = (jnp.zeros((num_inputs, hp), compute_dtype)
           .at[:, :hidden].set(w1.astype(compute_dtype)))
    b1p = (jnp.zeros((1, hp), compute_dtype)
           .at[0, :hidden].set(b1.reshape(-1).astype(compute_dtype))
           .at[0, oc].set(1.0))
    w2p = (jnp.zeros((hp, hp), compute_dtype)
           .at[:hidden, :hidden].set(w2.astype(compute_dtype))
           .at[oc, :hidden].set(b2.reshape(-1).astype(compute_dtype))
           .at[oc, oc].set(1.0))
    # Final layer stored transposed as an 8-row slab (row 0 = [W3^T, b3, 0...])
    # so the output matmul/store is fully (8,128)-aligned and lane-dense.
    w3r = (jnp.zeros((8, hp), compute_dtype)
           .at[0, :hidden].set(w3.reshape(-1).astype(compute_dtype))
           .at[0, oc].set(b3.reshape(()).astype(compute_dtype)))
    return {"w1p": w1p, "b1p": b1p, "w2p": w2p, "w3r": w3r}


def value_network_forward(state, fused_params, *, compute_dtype=jnp.float32,
                          tb_max=512):
    """state: [B, num_inputs] f32; fused_params: output of prepare_params."""
    assert tb_max % 128 == 0
    w1p = fused_params["w1p"]
    b1p = fused_params["b1p"]
    w2p = fused_params["w2p"]
    w3r = fused_params["w3r"]

    B, num_inputs = state.shape
    if B <= tb_max:
        tb = _round_up(B, 8)      # single tile; block == full array is allowed
        b_pad = tb
    else:
        tb = tb_max               # multiple of 128 -> unmasked lane-dense stores
        b_pad = _round_up(B, tb)
    if b_pad != B:
        state = jnp.pad(state, ((0, b_pad - B), (0, 0)))

    grid = (b_pad // tb,)
    kernel = functools.partial(_value_kernel, compute_dtype=compute_dtype)

    out = pl.pallas_call(
        kernel,
        out_shape=jax.ShapeDtypeStruct((8, b_pad), jnp.float32),
        grid=grid,
        in_specs=[
            # Batch-tiled state; pipelined (double-buffered) across the grid.
            pl.BlockSpec((tb, num_inputs), lambda i: (i, 0)),
            # Parameters: constant index map -> VMEM-resident, DMA'd once.
            pl.BlockSpec(w1p.shape, lambda i: (0, 0)),
            pl.BlockSpec(b1p.shape, lambda i: (0, 0)),
            pl.BlockSpec(w2p.shape, lambda i: (0, 0)),
            pl.BlockSpec(w3r.shape, lambda i: (0, 0)),
        ],
        # Lane-dense output: batch on the lane axis, value in row 0.
        out_specs=pl.BlockSpec((8, tb), lambda i: (0, i)),
        compiler_params=pltpu.CompilerParams(
            dimension_semantics=("parallel",)),
    )(state, w1p, b1p, w2p, w3r)

    # Row 0 holds the value head; return (B, 1) to match the PyTorch module.
    return out[0, :B][:, None]


def _reference_forward(state, params):
    h1 = jnp.maximum(state @ params["w1"] + params["b1"], 0.0)
    h2 = jnp.maximum(h1 @ params["w2"] + params["b2"], 0.0)
    return h2 @ params["w3"] + params["b3"]


if __name__ == "__main__":
    num_inputs, hidden_dim = 16, 32

    key = jax.random.PRNGKey(0)
    k_params, k_state = jax.random.split(key)
    params = init_params(k_params, num_inputs, hidden_dim)
    fused_f32 = prepare_params(params, compute_dtype=jnp.float32)

    # Small batch (single tile).
    state_small = jax.random.normal(k_state, (8, num_inputs), jnp.float32)
    out_small = jax.block_until_ready(value_network_forward(state_small, fused_f32))
    ref_small = _reference_forward(state_small, params)
    assert out_small.shape == (8, 1), out_small.shape
    assert jnp.allclose(out_small, ref_small, atol=1e-5, rtol=1e-5), \
        f"max err {jnp.max(jnp.abs(out_small - ref_small))}"

    # Larger batch: exercises the multi-tile grid + batch padding.
    state_big = jax.random.normal(jax.random.PRNGKey(1), (1000, num_inputs),
                                  jnp.float32)
    out_big = jax.block_until_ready(value_network_forward(state_big, fused_f32))
    ref_big = _reference_forward(state_big, params)
    assert out_big.shape == (1000, 1), out_big.shape
    assert jnp.allclose(out_big, ref_big, atol=1e-5, rtol=1e-5), \
        f"max err {jnp.max(jnp.abs(out_big - ref_big))}"

    # bf16 MXU fast path (v6e/v7x): f32 accumulation, looser tolerance.
    fused_bf16 = prepare_params(params, compute_dtype=jnp.bfloat16)
    out_bf16 = jax.block_until_ready(
        value_network_forward(state_big, fused_bf16, compute_dtype=jnp.bfloat16))
    assert jnp.allclose(out_bf16, ref_big, atol=1e-1, rtol=1e-1), \
        f"max err {jnp.max(jnp.abs(out_bf16 - ref_big))}"

    print("KERNEL_OK")
</pallas_src>

<mosaic_0001>
module attributes {stable_mosaic.version = 11 : i64} {
  func.func @_value_kernel(%arg0: i32, %arg1: memref<8x16xf32, #tpu.memory_space<vmem>>, %arg2: memref<16x128xf32, #tpu.memory_space<vmem>>, %arg3: memref<1x128xf32, #tpu.memory_space<vmem>>, %arg4: memref<128x128xf32, #tpu.memory_space<vmem>>, %arg5: memref<8x128xf32, #tpu.memory_space<vmem>>, %arg6: memref<8x8xf32, #tpu.memory_space<vmem>>) attributes {dimension_semantics = [#tpu.dimension_semantics<parallel>], iteration_bounds = array<i64: 1>, scalar_prefetch = 0 : i64, scratch_operands = 0 : i64, tpu.core_type = #tpu.core_type<tc>, window_params = [{transform_indices = @transform_0, window_bounds = array<i64: 8, 16>}, {pipeline_mode = #tpu.pipeline_mode<synchronous>, transform_indices = @transform_1, window_bounds = array<i64: 16, 128>}, {pipeline_mode = #tpu.pipeline_mode<synchronous>, transform_indices = @transform_2, window_bounds = array<i64: 1, 128>}, {pipeline_mode = #tpu.pipeline_mode<synchronous>, transform_indices = @transform_3, window_bounds = array<i64: 128, 128>}, {pipeline_mode = #tpu.pipeline_mode<synchronous>, transform_indices = @transform_4, window_bounds = array<i64: 8, 128>}, {transform_indices = @transform_5, window_bounds = array<i64: 8, 8>}]} {
    %c0 = arith.constant 0 : index
    %c0_0 = arith.constant 0 : index
    %0 = vector.load %arg1[%c0, %c0_0] : memref<8x16xf32, #tpu.memory_space<vmem>>, vector<8x16xf32>
    %c0_1 = arith.constant 0 : index
    %c0_2 = arith.constant 0 : index
    %1 = vector.load %arg2[%c0_1, %c0_2] : memref<16x128xf32, #tpu.memory_space<vmem>>, vector<16x128xf32>
    %cst = arith.constant dense<0.000000e+00> : vector<8x128xf32>
    %2 = tpu.matmul %0, %1, %cst {dimension_numbers = #tpu.dot_dimension_numbers<[1], [0], [0], [1], [0, 0, 1, 1], [], []>} : vector<8x16xf32>, vector<16x128xf32>, vector<8x128xf32> -> vector<8x128xf32>
    %c0_3 = arith.constant 0 : index
    %c0_4 = arith.constant 0 : index
    %3 = vector.load %arg3[%c0_3, %c0_4] : memref<1x128xf32, #tpu.memory_space<vmem>>, vector<1x128xf32>
    %4 = vector.broadcast %3 : vector<1x128xf32> to vector<8x128xf32>
    %5 = arith.addf %2, %4 : vector<8x128xf32>
    %cst_5 = arith.constant 0.000000e+00 : f32
    %6 = vector.broadcast %cst_5 : f32 to vector<8x128xf32>
    %7 = arith.maximumf %5, %6 : vector<8x128xf32>
    %c0_6 = arith.constant 0 : index
    %c0_7 = arith.constant 0 : index
    %8 = vector.load %arg4[%c0_6, %c0_7] : memref<128x128xf32, #tpu.memory_space<vmem>>, vector<128x128xf32>
    %cst_8 = arith.constant dense<0.000000e+00> : vector<8x128xf32>
    %9 = tpu.matmul %7, %8, %cst_8 {dimension_numbers = #tpu.dot_dimension_numbers<[1], [0], [0], [1], [0, 0, 1, 1], [], []>} : vector<8x128xf32>, vector<128x128xf32>, vector<8x128xf32> -> vector<8x128xf32>
    %cst_9 = arith.constant 0.000000e+00 : f32
    %10 = vector.broadcast %cst_9 : f32 to vector<8x128xf32>
    %11 = arith.maximumf %9, %10 : vector<8x128xf32>
    %c0_10 = arith.constant 0 : index
    %c0_11 = arith.constant 0 : index
    %12 = vector.load %arg5[%c0_10, %c0_11] : memref<8x128xf32, #tpu.memory_space<vmem>>, vector<8x128xf32>
    %cst_12 = arith.constant dense<0.000000e+00> : vector<8x8xf32>
    %13 = tpu.matmul %12, %11, %cst_12 {dimension_numbers = #tpu.dot_dimension_numbers<[1], [1], [0], [0], [0, 0, 1, 0], [], []>} : vector<8x128xf32>, vector<8x128xf32>, vector<8x8xf32> -> vector<8x8xf32>
    %c0_13 = arith.constant 0 : index
    %c0_14 = arith.constant 0 : index
    %14 = vector.load %arg6[%c0_13, %c0_14] : memref<8x8xf32, #tpu.memory_space<vmem>>, vector<8x8xf32>
    tpu.vector_store %arg6[%c0_13, %c0_14], %13 {strides = array<i32>} : memref<8x8xf32, #tpu.memory_space<vmem>>, vector<8x8xf32>,
    return
  }
  func.func @transform_0(%arg0: i32) -> (i32, i32) {
    %c0_i32 = arith.constant 0 : i32
    %c0_i32_0 = arith.constant 0 : i32
    return %arg0, %c0_i32 : i32, i32
  }
  func.func @transform_1(%arg0: i32) -> (i32, i32) {
    %c0_i32 = arith.constant 0 : i32
    %c0_i32_0 = arith.constant 0 : i32
    %c0_i32_1 = arith.constant 0 : i32
    return %c0_i32, %c0_i32_0 : i32, i32
  }
  func.func @transform_2(%arg0: i32) -> (i32, i32) {
    %c0_i32 = arith.constant 0 : i32
    %c0_i32_0 = arith.constant 0 : i32
    %c0_i32_1 = arith.constant 0 : i32
    return %c0_i32, %c0_i32_0 : i32, i32
  }
  func.func @transform_3(%arg0: i32) -> (i32, i32) {
    %c0_i32 = arith.constant 0 : i32
    %c0_i32_0 = arith.constant 0 : i32
    %c0_i32_1 = arith.constant 0 : i32
    return %c0_i32, %c0_i32_0 : i32, i32
  }
  func.func @transform_4(%arg0: i32) -> (i32, i32) {
    %c0_i32 = arith.constant 0 : i32
    %c0_i32_0 = arith.constant 0 : i32
    %c0_i32_1 = arith.constant 0 : i32
    return %c0_i32, %c0_i32_0 : i32, i32
  }
  func.func @transform_5(%arg0: i32) -> (i32, i32) {
    %c0_i32 = arith.constant 0 : i32
    %c0_i32_0 = arith.constant 0 : i32
    return %c0_i32, %arg0 : i32, i32
  }
}

</mosaic_0001>

<llo_original>
// kernel: tpu_custom_call.1
$region0: #{tpu_custom_call.1}
  #allocation0 [shape = 'u32[]', space=smem, size = 0x4, offset = 0x4, fixed_abs, tag = 'smem constant byte address 0x4 - core index']
  #allocation1 [shape = 'u32[144,128]{1,0:T(1,128)}', space=vmem, size = 0x12000, scoped, tag = 'internal scratch']
  %s0 = inlined_call_operand.hbm [shape: f32[8,16], index: 0, kind: input, shape index: {}]
  %s1 = inlined_call_operand.hbm [shape: f32[16,128], index: 1, kind: input, shape index: {}]
  %s2 = inlined_call_operand.vmem [shape: f32[1,128], index: 2, kind: input, shape index: {}]
  %s3 = inlined_call_operand.hbm [shape: f32[128,128], index: 3, kind: input, shape index: {}]
  %s4 = inlined_call_operand.vmem [shape: f32[8,128], index: 4, kind: input, shape index: {}]
  %s5 = inlined_call_operand.hbm [shape: f32[8,8], index: 5, kind: output, shape index: {}]
  %s6 = sld [smem:[#allocation0]]
  $region42: #{tpu_custom_call.1} parent=0
    _
  %s8 = ssub.s32 1, %s6
  %s9 = scalar_select 0, %s8, %s6
  $region1: #{tpu_custom_call.1} parent=0
    #allocation2 [shape = 'u8[4096]{0}', space=vmem, size = 0x1000, scoped, tag = 'input window, operand 0, single buffered']
    #allocation3 [shape = 's32[1]{0}', space=sflag, size = 0x4, scoped, tag = 'scoped memory for tpu_custom_call.1']
    #allocation4 [shape = 's32[1]{0}', space=sflag, size = 0x4, scoped, tag = 'scoped memory for tpu_custom_call.1']
    #allocation5 [shape = 'u8[8192]{0}', space=vmem, size = 0x2000, scoped, tag = 'input window, operand 1, single buffered']
    #allocation6 [shape = 's32[1]{0}', space=sflag, size = 0x4, scoped, tag = 'scoped memory for tpu_custom_call.1']
    #allocation7 [shape = 'u8[65536]{0}', space=vmem, size = 0x10000, scoped, tag = 'input window, operand 3, single buffered']
    #allocation8 [shape = 'u8[4096]{0}', space=vmem, size = 0x1000, scoped, tag = 'output window, operand 0, single buffered']
    %10 = vsyncpa [#allocation3], 0
    %11 = vsyncpa [#allocation6], 0
    %12 = vsyncpa [#allocation4], 0
    // Predicated region
    $region2: #{tpu_custom_call.1} parent=1 // pred_check
      _
    $region3: #{tpu_custom_call.1} parent=1 // pred_check_branch
      %14 = sbr.rel (0) target = $region5
    $region4: #{tpu_custom_call.1} parent=1 // pred_region
      %s16 = ssub.s32 128, 128
      %17 = vsyncadd [#allocation3], %s16
      %s19 = sshll.u32 [#allocation2], 4
      %s20 = int_to_ptr.vmem [resolvable:$true] %s19
      %22 = dma.hbm_to_vmem [thread:$0]  %s0, 128, %s20, [#allocation3]
    $region5: #{tpu_custom_call.1} parent=1 // pred_fallthru
      _
    // Predicated region
    $region6: #{tpu_custom_call.1} parent=1 // pred_check
      _
    $region7: #{tpu_custom_call.1} parent=1 // pred_check_branch
      %24 = sbr.rel (0) target = $region9
    $region8: #{tpu_custom_call.1} parent=1 // pred_region
      %s26 = ssub.s32 256, 256
      %27 = vsyncadd [#allocation6], %s26
      %s28 = sshll.u32 [#allocation5], 4
      %s29 = int_to_ptr.vmem [resolvable:$true] %s28
      %34 = dma.hbm_to_vmem [thread:$0]  %s1, 256, %s29, [#allocation6], 128, 128, 8
    $region9: #{tpu_custom_call.1} parent=1 // pred_fallthru
      _
    // Predicated region
    $region10: #{tpu_custom_call.1} parent=1 // pred_check
      _
    $region11: #{tpu_custom_call.1} parent=1 // pred_check_branch
      %36 = sbr.rel (0) target = $region13
    $region12: #{tpu_custom_call.1} parent=1 // pred_region
      _
    $region13: #{tpu_custom_call.1} parent=1 // pred_fallthru
      _
    // Predicated region
    $region14: #{tpu_custom_call.1} parent=1 // pred_check
      _
    $region15: #{tpu_custom_call.1} parent=1 // pred_check_branch
      %38 = sbr.rel (0) target = $region17
    $region16: #{tpu_custom_call.1} parent=1 // pred_region
      %s40 = ssub.s32 2048, 2048
      %41 = vsyncadd [#allocation6], %s40
      %s42 = sshll.u32 [#allocation7], 4
      %s43 = int_to_ptr.vmem [resolvable:$true] %s42
      %48 = dma.hbm_to_vmem [thread:$0]  %s3, 2048, %s43, [#allocation6], 128, 128, 8
    $region17: #{tpu_custom_call.1} parent=1 // pred_fallthru
      _
    // Predicated region
    $region18: #{tpu_custom_call.1} parent=1 // pred_check
      _
    $region19: #{tpu_custom_call.1} parent=1 // pred_check_branch
      %50 = sbr.rel (0) target = $region21
    $region20: #{tpu_custom_call.1} parent=1 // pred_region
      _
    $region21: #{tpu_custom_call.1} parent=1 // pred_fallthru
      _
    // Predicated region
    $region22: #{tpu_custom_call.1} parent=1 // pred_check
      _
    $region23: #{tpu_custom_call.1} parent=1 // pred_check_branch
      %52 = sbr.rel (0) target = $region25
    $region24: #{tpu_custom_call.1} parent=1 // pred_region
      %53 = dma.done [#allocation3], 128
    $region25: #{tpu_custom_call.1} parent=1 // pred_fallthru
      _
    // Predicated region
    $region26: #{tpu_custom_call.1} parent=1 // pred_check
      _
    $region27: #{tpu_custom_call.1} parent=1 // pred_check_branch
      %55 = sbr.rel (0) target = $region29
    $region28: #{tpu_custom_call.1} parent=1 // pred_region
      %56 = dma.done [#allocation6], 256
    $region29: #{tpu_custom_call.1} parent=1 // pred_fallthru
      _
    // Predicated region
    $region30: #{tpu_custom_call.1} parent=1 // pred_check
      _
    $region31: #{tpu_custom_call.1} parent=1 // pred_check_branch
      %58 = sbr.rel (0) target = $region33
    $region32: #{tpu_custom_call.1} parent=1 // pred_region
      %59 = dma.done [#allocation6], 2048
    $region33: #{tpu_custom_call.1} parent=1 // pred_fallthru
      _
    %v60 = vld [vmem:[#allocation2] sm:$0xff]
    %v61 = vld [vmem:[#allocation5] sm:$0xff]
    %v62 = vld [vmem:[#allocation5 + $0x8] sm:$0xff]
    %v63 = vld [vmem:[%s2] sm:$0x1]
    %v65 = vlaneseq
    %v66 = vshrl.u32 %v65, 7
    %v67 = vsub.s32 0, %v66
    %v68 = vrot.slane %v63, %v67
    %vm70 = vcmask 130048
    %v72 = vsel %vm70, %v60, 0
    %74 = vmatprep.subr.mxu0 0.0
    %75 = vmatpush1.msra.mxu0 %v61
    %76 = vmatprep.subr.mxu0 0.0
    %77 = vmatpush1.msra.mxu0 %v62
    %78 = vmatprep.subr.mxu0 0.0
    %79 = vmatpush1.msra.mxu0 0.0
    %80 = vmatprep.subr.mxu0 0.0
    %81 = vmatpush1.msra.mxu0 0.0
    %82 = vmatprep.subr.mxu0 0.0
    %83 = vmatpush1.msra.mxu0 0.0
    %84 = vmatprep.subr.mxu0 0.0
    %85 = vmatpush1.msra.mxu0 0.0
    %86 = vmatprep.subr.mxu0 0.0
    %87 = vmatpush1.msra.mxu0 0.0
    %88 = vmatprep.subr.mxu0 0.0
    %89 = vmatpush1.msra.mxu0 0.0
    %90 = vmatprep.subr.mxu0 0.0
    %91 = vmatpush1.msra.mxu0 0.0
    %92 = vmatprep.subr.mxu0 0.0
    %93 = vmatpush1.msra.mxu0 0.0
    %94 = vmatprep.subr.mxu0 0.0
    %95 = vmatpush1.msra.mxu0 0.0
    %96 = vmatprep.subr.mxu0 0.0
    %97 = vmatpush1.msra.mxu0 0.0
    %98 = vmatprep.subr.mxu0 0.0
    %99 = vmatpush1.msra.mxu0 0.0
    %100 = vmatprep.subr.mxu0 0.0
    %101 = vmatpush1.msra.mxu0 0.0
    %102 = vmatprep.subr.mxu0 0.0
    %103 = vmatpush1.msra.mxu0 0.0
    %104 = vmatprep.subr.mxu0 0.0
    %105 = vmatpush1.msra.mxu0 0.0
    %106 = vmatprep.subr.mxu0 0.0
    %107 = vmatpush1.msra.mxu0 0.0
    %108 = vmatprep.subr.mxu0 0.0
    %109 = vmatpush1.msra.mxu0 0.0
    %110 = vmatprep.subr.mxu0 0.0
    %111 = vmatpush1.msra.mxu0 0.0
    %112 = vmatprep.subr.mxu0 0.0
    %113 = vmatpush1.msra.mxu0 0.0
    %114 = vmatprep.subr.mxu0 0.0
    %115 = vmatpush1.msra.mxu0 0.0
    %116 = vmatprep.subr.mxu0 0.0
    %117 = vmatpush1.msra.mxu0 0.0
    %118 = vmatprep.subr.mxu0 0.0
    %119 = vmatpush1.msra.mxu0 0.0
    %120 = vmatprep.subr.mxu0 0.0
    %121 = vmatpush1.msra.mxu0 0.0
    %122 = vmatprep.subr.mxu0 0.0
    %123 = vmatpush1.msra.mxu0 0.0
    %124 = vmatprep.subr.mxu0 0.0
    %125 = vmatpush1.msra.mxu0 0.0
    %126 = vmatprep.subr.mxu0 0.0
    %127 = vmatpush1.msra.mxu0 0.0
    %128 = vmatprep.subr.mxu0 0.0
    %129 = vmatpush1.msra.mxu0 0.0
    %130 = vmatprep.subr.mxu0 0.0
    %131 = vmatpush1.msra.mxu0 0.0
    %132 = vmatprep.subr.mxu0 0.0
    %133 = vmatpush1.msra.mxu0 0.0
    %134 = vmatprep.subr.mxu0 0.0
    %135 = vmatpush1.msra.mxu0 0.0
    %136 = vmatprep.subr.mxu0 0.0
    %137 = vmatpush1.msra.mxu0 0.0
    %138 = vmatprep.mubr.f32.mxu0 0.0
    %139 = vmatmul.mubr.f32.gmra.mrb[0].mxu0 %v72
    %v140 = vpop.f32.mrb[0].mxu0
    %v141 = vadd.f32 %v68, %v140
    %v142 = vpop.f32.mrb[0].mxu0
    %143 = vdwg.mxu0
    %v144 = vmax.f32 %v141, 0.0
    %v145 = vld [vmem:[#allocation7] sm:$0xff]
    %v146 = vld [vmem:[#allocation7 + $0x8] sm:$0xff]
    %v147 = vld [vmem:[#allocation7 + $0x10] sm:$0xff]
    %v148 = vld [vmem:[#allocation7 + $0x18] sm:$0xff]
    %v149 = vld [vmem:[#allocation7 + $0x20] sm:$0xff]
    %v150 = vld [vmem:[#allocation7 + $0x28] sm:$0xff]
    %v151 = vld [vmem:[#allocation7 + $0x30] sm:$0xff]
    %v152 = vld [vmem:[#allocation7 + $0x38] sm:$0xff]
    %v153 = vld [vmem:[#allocation7 + $0x40] sm:$0xff]
    %v154 = vld [vmem:[#allocation7 + $0x48] sm:$0xff]
    %v155 = vld [vmem:[#allocation7 + $0x50] sm:$0xff]
    %v156 = vld [vmem:[#allocation7 + $0x58] sm:$0xff]
    %v157 = vld [vmem:[#allocation7 + $0x60] sm:$0xff]
    %v158 = vld [vmem:[#allocation7 + $0x68] sm:$0xff]
    %v159 = vld [vmem:[#allocation7 + $0x70] sm:$0xff]
    %v160 = vld [vmem:[#allocation7 + $0x78] sm:$0xff]
    %161 = vmatprep.subr.mxu0 0.0
    %162 = vmatpush1.msra.mxu0 %v145
    %163 = vmatprep.subr.mxu0 0.0
    %164 = vmatpush1.msra.mxu0 %v146
    %165 = vmatprep.subr.mxu0 0.0
    %166 = vmatpush1.msra.mxu0 %v147
    %167 = vmatprep.subr.mxu0 0.0
    %168 = vmatpush1.msra.mxu0 %v148
    %169 = vmatprep.subr.mxu0 0.0
    %170 = vmatpush1.msra.mxu0 %v149
    %171 = vmatprep.subr.mxu0 0.0
    %172 = vmatpush1.msra.mxu0 %v150
    %173 = vmatprep.subr.mxu0 0.0
    %174 = vmatpush1.msra.mxu0 %v151
    %175 = vmatprep.subr.mxu0 0.0
    %176 = vmatpush1.msra.mxu0 %v152
    %177 = vmatprep.subr.mxu0 0.0
    %178 = vmatpush1.msra.mxu0 %v153
    %179 = vmatprep.subr.mxu0 0.0
    %180 = vmatpush1.msra.mxu0 %v154
    %181 = vmatprep.subr.mxu0 0.0
    %182 = vmatpush1.msra.mxu0 %v155
    %183 = vmatprep.subr.mxu0 0.0
    %184 = vmatpush1.msra.mxu0 %v156
    %185 = vmatprep.subr.mxu0 0.0
    %186 = vmatpush1.msra.mxu0 %v157
    %187 = vmatprep.subr.mxu0 0.0
    %188 = vmatpush1.msra.mxu0 %v158
    %189 = vmatprep.subr.mxu0 0.0
    %190 = vmatpush1.msra.mxu0 %v159
    %191 = vmatprep.subr.mxu0 0.0
    %192 = vmatpush1.msra.mxu0 %v160
    %193 = vmatprep.subr.mxu0 0.0
    %194 = vmatpush1.msra.mxu0 0.0
    %195 = vmatprep.subr.mxu0 0.0
    %196 = vmatpush1.msra.mxu0 0.0
    %197 = vmatprep.subr.mxu0 0.0
    %198 = vmatpush1.msra.mxu0 0.0
    %199 = vmatprep.subr.mxu0 0.0
    %200 = vmatpush1.msra.mxu0 0.0
    %201 = vmatprep.subr.mxu0 0.0
    %202 = vmatpush1.msra.mxu0 0.0
    %203 = vmatprep.subr.mxu0 0.0
    %204 = vmatpush1.msra.mxu0 0.0
    %205 = vmatprep.subr.mxu0 0.0
    %206 = vmatpush1.msra.mxu0 0.0
    %207 = vmatprep.subr.mxu0 0.0
    %208 = vmatpush1.msra.mxu0 0.0
    %209 = vmatprep.subr.mxu0 0.0
    %210 = vmatpush1.msra.mxu0 0.0
    %211 = vmatprep.subr.mxu0 0.0
    %212 = vmatpush1.msra.mxu0 0.0
    %213 = vmatprep.subr.mxu0 0.0
    %214 = vmatpush1.msra.mxu0 0.0
    %215 = vmatprep.subr.mxu0 0.0
    %216 = vmatpush1.msra.mxu0 0.0
    %217 = vmatprep.subr.mxu0 0.0
    %218 = vmatpush1.msra.mxu0 0.0
    %219 = vmatprep.subr.mxu0 0.0
    %220 = vmatpush1.msra.mxu0 0.0
    %221 = vmatprep.subr.mxu0 0.0
    %222 = vmatpush1.msra.mxu0 0.0
    %223 = vmatprep.subr.mxu0 0.0
    %224 = vmatpush1.msra.mxu0 0.0
    %225 = vmatprep.mubr.f32.mxu0 0.0
    %226 = vmatmul.mubr.f32.gmra.mrb[0].mxu0 %v144
    %v227 = vpop.f32.mrb[0].mxu0
    %v228 = vadd.f32 0.0, %v227
    %v229 = vpop.f32.mrb[0].mxu0
    %230 = vdwg.mxu0
    %v231 = vmax.f32 %v228, 0.0
    %v232 = vld [vmem:[%s4] sm:$0xff]
    %233 = vmatprep.subr.mxu0 0.0
    %234 = vmatpush1.xpose.msra.mxu0 %v231
    %235 = vmatprep.subr.mxu0 0.0
    %236 = vmatpush1.xpose.msra.mxu0 0.0
    %237 = vmatprep.subr.mxu0 0.0
    %238 = vmatpush1.xpose.msra.mxu0 0.0
    %239 = vmatprep.subr.mxu0 0.0
    %240 = vmatpush1.xpose.msra.mxu0 0.0
    %241 = vmatprep.subr.mxu0 0.0
    %242 = vmatpush1.xpose.msra.mxu0 0.0
    %243 = vmatprep.subr.mxu0 0.0
    %244 = vmatpush1.xpose.msra.mxu0 0.0
    %245 = vmatprep.subr.mxu0 0.0
    %246 = vmatpush1.xpose.msra.mxu0 0.0
    %247 = vmatprep.subr.mxu0 0.0
    %248 = vmatpush1.xpose.msra.mxu0 0.0
    %249 = vmatprep.subr.mxu0 0.0
    %250 = vmatpush1.xpose.msra.mxu0 0.0
    %251 = vmatprep.subr.mxu0 0.0
    %252 = vmatpush1.xpose.msra.mxu0 0.0
    %253 = vmatprep.subr.mxu0 0.0
    %254 = vmatpush1.xpose.msra.mxu0 0.0
    %255 = vmatprep.subr.mxu0 0.0
    %256 = vmatpush1.xpose.msra.mxu0 0.0
    %257 = vmatprep.subr.mxu0 0.0
    %258 = vmatpush1.xpose.msra.mxu0 0.0
    %259 = vmatprep.subr.mxu0 0.0
    %260 = vmatpush1.xpose.msra.mxu0 0.0
    %261 = vmatprep.subr.mxu0 0.0
    %262 = vmatpush1.xpose.msra.mxu0 0.0
    %263 = vmatprep.subr.mxu0 0.0
    %264 = vmatpush1.xpose.msra.mxu0 0.0
    %265 = vmatprep.subr.mxu0 0.0
    %266 = vmatpush1.xpose.msra.mxu0 0.0
    %267 = vmatprep.subr.mxu0 0.0
    %268 = vmatpush1.xpose.msra.mxu0 0.0
    %269 = vmatprep.subr.mxu0 0.0
    %270 = vmatpush1.xpose.msra.mxu0 0.0
    %271 = vmatprep.subr.mxu0 0.0
    %272 = vmatpush1.xpose.msra.mxu0 0.0
    %273 = vmatprep.subr.mxu0 0.0
    %274 = vmatpush1.xpose.msra.mxu0 0.0
    %275 = vmatprep.subr.mxu0 0.0
    %276 = vmatpush1.xpose.msra.mxu0 0.0
    %277 = vmatprep.subr.mxu0 0.0
    %278 = vmatpush1.xpose.msra.mxu0 0.0
    %279 = vmatprep.subr.mxu0 0.0
    %280 = vmatpush1.xpose.msra.mxu0 0.0
    %281 = vmatprep.subr.mxu0 0.0
    %282 = vmatpush1.xpose.msra.mxu0 0.0
    %283 = vmatprep.subr.mxu0 0.0
    %284 = vmatpush1.xpose.msra.mxu0 0.0
    %285 = vmatprep.subr.mxu0 0.0
    %286 = vmatpush1.xpose.msra.mxu0 0.0
    %287 = vmatprep.subr.mxu0 0.0
    %288 = vmatpush1.xpose.msra.mxu0 0.0
    %289 = vmatprep.subr.mxu0 0.0
    %290 = vmatpush1.xpose.msra.mxu0 0.0
    %291 = vmatprep.subr.mxu0 0.0
    %292 = vmatpush1.xpose.msra.mxu0 0.0
    %293 = vmatprep.subr.mxu0 0.0
    %294 = vmatpush1.xpose.msra.mxu0 0.0
    %295 = vmatprep.subr.mxu0 0.0
    %296 = vmatpush1.xpose.msra.mxu0 0.0
    %297 = vmatprep.mubr.f32.mxu0 0.0
    %298 = vmatmul.mubr.f32.gmra.mrb[0].mxu0 %v232
    %v299 = vpop.f32.mrb[0].mxu0
    %v300 = vadd.f32 0.0, %v299
    %v301 = vpop.f32.mrb[0].mxu0
    %302 = vdwg.mxu0
    %vm303 = vcmask 64512
    %304 = vst.msk [vmem:[#allocation8] sm:$0xff] %vm303, %v300
    // Predicated region
    $region34: #{tpu_custom_call.1} parent=1 // pred_check
      _
    $region35: #{tpu_custom_call.1} parent=1 // pred_check_branch
      %306 = sbr.rel (0) target = $region37
    $region36: #{tpu_custom_call.1} parent=1 // pred_region
      %s308 = ssub.s32 128, 128
      %309 = vsyncadd [#allocation4], %s308
      %s311 = sshll.u32 [#allocation8], 4
      %s312 = int_to_ptr.vmem [resolvable:$true] %s311
      %314 = dma.vmem_to_hbm [thread:$0]  %s312, 128, %s5, [#allocation4]
    $region37: #{tpu_custom_call.1} parent=1 // pred_fallthru
      _
    // Predicated region
    $region38: #{tpu_custom_call.1} parent=1 // pred_check
      _
    $region39: #{tpu_custom_call.1} parent=1 // pred_check_branch
      %316 = sbr.rel (0) target = $region41
    $region40: #{tpu_custom_call.1} parent=1 // pred_region
      %317 = dma.done [#allocation4], 128
    $region41: #{tpu_custom_call.1} parent=1 // pred_fallthru
      _
    %318 = vsyncpa [#allocation3], 1
    %319 = vsyncpa [#allocation6], 1
    %320 = vsyncpa [#allocation4], 1

</llo_original>
